<compile_context>
chip_gen: v6e
topology: v6e:2x2x1
jax: 0.10.0
libtpu: 0.0.40
codegen_flags: <defaults>
</compile_context>

<pallas_src>
import functools

import jax
import jax.numpy as jnp
from jax.experimental import pallas as pl
from jax.experimental.pallas import tpu as pltpu


# ---------------------------------------------------------------------------
# Kernel
# ---------------------------------------------------------------------------
def sepconv1d_kernel(xw_ref, w_ref, b_ref, pos_ref, neg_ref, shift_ref, o_ref,
                     *, kernel_size, stride, lt):
    """One (batch, time-tile) step.

    xw_ref:   (stride, Ci, Lt + (K-1)//stride)   phase-split input window (+halo)
    w_ref:    (K, Co, Ci)                        folded depthwise*pointwise weights
    b_ref:    (Co, 1)                            fused conv bias (w_pw @ b_dw + b_pw)
    pos_ref:  (Co, 1)                            BN scale            (y > 0 branch)
    neg_ref:  (Co, 1)                            prelu_a * BN scale  (y <= 0 branch)
    shift_ref:(Co, 1)                            BN shift
    o_ref:    (Co, Lt)                           lane-dense output tile
    """
    co = o_ref.shape[0]
    acc = jnp.zeros((co, lt), jnp.float32)
    # K is tiny and static -> unrolled; each tap is a contiguous shifted read of the
    # VMEM tile feeding one MXU matmul with f32 accumulation.
    for k in range(kernel_size):
        ph = k % stride
        q = k // stride
        win = xw_ref[ph, :, q:q + lt]                       # (Ci, Lt), static offsets
        acc = acc + jnp.dot(w_ref[k], win,
                            preferred_element_type=jnp.float32)

    y = acc + b_ref[...]                                    # (Co, 1) broadcast bias
    # PReLU (scalar) + BatchNorm folded into pos/neg scale and shift.
    y = jnp.where(y > 0, y * pos_ref[...], y * neg_ref[...]) + shift_ref[...]
    o_ref[...] = y.astype(o_ref.dtype)


# ---------------------------------------------------------------------------
# Wrapper
# ---------------------------------------------------------------------------
def _round_up(v, m):
    return ((v + m - 1) // m) * m


def _choose_lt(lo, ci, co, stride, in_bytes):
    """Pick a lane tile (multiple of 128) that keeps double-buffered blocks small
    enough for v7x's 64 MiB VMEM while staying near the measured sweet spot."""
    lt = min(1024, _round_up(lo, 128))
    budget = 12 * 1024 * 1024
    while lt > 128 and 2 * (stride * ci * lt * in_bytes + co * lt * 4) > budget:
        lt -= 128
    return max(lt, 128)


def sepconv1d(x, params, *, kernel, stride, pad,
              compute_dtype=jnp.bfloat16, lt=None):
    N, Ci, L = x.shape
    Co = params["w_pw"].shape[0]
    K, s = kernel, stride
    Lo = (L + 2 * pad - K) // s + 1

    in_bytes = jnp.dtype(compute_dtype).itemsize
    if lt is None:
        lt = _choose_lt(Lo, Ci, Co, s, in_bytes)
    lt = max(128, _round_up(lt, 128))
    n_t = pl.cdiv(Lo, lt)
    Lo_pad = n_t * lt                     # lane-dense (multiple-of-128) output length

    qmax = (K - 1) // s                   # halo (in phase-split positions)
    Lm = lt + qmax                        # per-tile input window length

    # --- build the phase-split, halo-windowed input layout in the wrapper ---
    # xp[c, i] with i = m*s + p ;  xr[c, m, p] = xp[c, m*s + p]
    M = max(Lo_pad + qmax, -(-(L + pad) // s))
    Lpp = M * s
    right = Lpp - pad - L                 # >= 0 by construction
    xp = jnp.pad(x.astype(compute_dtype), ((0, 0), (0, 0), (pad, right)))
    xr = xp.reshape(N, Ci, M, s)
    tiles = [xr[:, :, t * lt: t * lt + Lm, :] for t in range(n_t)]
    xw = jnp.stack(tiles, axis=1)                      # (N, n_t, Ci, Lm, s)
    xw = jnp.transpose(xw, (0, 1, 4, 2, 3))            # (N, n_t, s, Ci, Lm)

    # --- fold depthwise into K pointwise matrices, fuse biases / PReLU / BN ---
    w_dw = params["w_dw"].astype(jnp.float32)          # (Ci, K)
    w_pw = params["w_pw"].astype(jnp.float32)          # (Co, Ci)
    w_stack = (w_pw[None, :, :] * w_dw.T[:, None, :]).astype(compute_dtype)  # (K,Co,Ci)
    bias0 = (w_pw @ params["b_dw"].astype(jnp.float32)
             + params["b_pw"].astype(jnp.float32)).reshape(Co, 1)

    eps = 1e-5
    bn_scale = params["bn_gamma"] / jnp.sqrt(params["bn_var"] + eps)
    bn_shift = params["bn_beta"] - params["bn_mean"] * bn_scale
    a = params["prelu_a"].reshape(())                  # PReLU default: 1 shared param
    pos = bn_scale.reshape(Co, 1).astype(jnp.float32)
    neg = (a * bn_scale).reshape(Co, 1).astype(jnp.float32)
    shift = bn_shift.reshape(Co, 1).astype(jnp.float32)

    kern = functools.partial(sepconv1d_kernel, kernel_size=K, stride=s, lt=lt)

    out_pad = pl.pallas_call(
        kern,
        out_shape=jax.ShapeDtypeStruct((N, Co, Lo_pad), jnp.float32),
        grid=(N, n_t),
        in_specs=[
            # phase-split input window with halo; last two dims are full array dims
            pl.BlockSpec((None, None, s, Ci, Lm), lambda n, t: (n, t, 0, 0, 0)),
            pl.BlockSpec((K, Co, Ci), lambda n, t: (0, 0, 0)),
            pl.BlockSpec((Co, 1), lambda n, t: (0, 0)),
            pl.BlockSpec((Co, 1), lambda n, t: (0, 0)),
            pl.BlockSpec((Co, 1), lambda n, t: (0, 0)),
            pl.BlockSpec((Co, 1), lambda n, t: (0, 0)),
        ],
        out_specs=pl.BlockSpec((None, Co, lt), lambda n, t: (n, 0, t)),
        compiler_params=pltpu.CompilerParams(
            dimension_semantics=("parallel", "parallel"),
            vmem_limit_bytes=48 * 1024 * 1024,   # < v7x 64 MiB physical, > 32 MiB default
        ),
    )(xw, w_stack, bias0, pos, neg, shift)

    return out_pad[:, :, :Lo]


# ---------------------------------------------------------------------------
# Pure-JAX reference with the exact PyTorch-module semantics
# ---------------------------------------------------------------------------
def sepconv1d_reference(x, params, *, kernel, stride, pad):
    N, Ci, L = x.shape
    Co = params["w_pw"].shape[0]
    Lo = (L + 2 * pad - kernel) // stride + 1
    xp = jnp.pad(x, ((0, 0), (0, 0), (pad, pad)))

    # depthwise (groups = Ci)
    h = jnp.zeros((N, Ci, Lo), jnp.float32)
    for k in range(kernel):
        xs = jax.lax.slice(xp, (0, 0, k),
                           (N, Ci, k + stride * (Lo - 1) + 1), (1, 1, stride))
        h = h + params["w_dw"][None, :, k:k + 1] * xs
    h = h + params["b_dw"][None, :, None]
    # pointwise 1x1
    y = jnp.einsum("oc,ncl->nol", params["w_pw"], h) + params["b_pw"][None, :, None]
    # PReLU (single shared parameter)
    a = params["prelu_a"][0]
    y = jnp.where(y > 0, y, a * y)
    # BatchNorm1d (eval mode)
    eps = 1e-5
    scale = params["bn_gamma"] / jnp.sqrt(params["bn_var"] + eps)
    shift = params["bn_beta"] - params["bn_mean"] * scale
    return y * scale[None, :, None] + shift[None, :, None]


# ---------------------------------------------------------------------------
if __name__ == "__main__":
    # Small, deterministic configuration.
    N, Ci, Co, L = 2, 4, 8, 16
    K, STRIDE, PAD = 3, 1, 1

    key = jax.random.PRNGKey(0)
    ks = jax.random.split(key, 10)

    params = {
        # depthwise: PyTorch weight (ni, 1, K) -> stored (Ci, K)
        "w_dw": jax.random.normal(ks[0], (Ci, K), jnp.float32) * 0.3,
        "b_dw": jax.random.normal(ks[1], (Ci,), jnp.float32) * 0.1,
        # pointwise: PyTorch weight (no, ni, 1) -> stored (Co, Ci)
        "w_pw": jax.random.normal(ks[2], (Co, Ci), jnp.float32) * 0.3,
        "b_pw": jax.random.normal(ks[3], (Co,), jnp.float32) * 0.1,
        # PReLU default init 0.25 (single shared parameter)
        "prelu_a": jnp.array([0.25], jnp.float32),
        # BatchNorm1d (eval mode) — deterministic non-trivial stats/affine
        "bn_gamma": 1.0 + 0.1 * jax.random.normal(ks[4], (Co,), jnp.float32),
        "bn_beta": 0.1 * jax.random.normal(ks[5], (Co,), jnp.float32),
        "bn_mean": 0.1 * jax.random.normal(ks[6], (Co,), jnp.float32),
        "bn_var": 1.0 + 0.1 * jax.nn.softplus(jax.random.normal(ks[7], (Co,), jnp.float32)),
    }

    x = jax.random.normal(ks[8], (N, Ci, L), jnp.float32)

    ref = sepconv1d_reference(x, params, kernel=K, stride=STRIDE, pad=PAD)
    expected_shape = (N, Co, (L + 2 * PAD - K) // STRIDE + 1)
    assert ref.shape == expected_shape

    # f32 compute path: tight check of the folded-weight / fused-epilogue math.
    out_f32 = jax.block_until_ready(
        sepconv1d(x, params, kernel=K, stride=STRIDE, pad=PAD,
                  compute_dtype=jnp.float32))
    assert out_f32.shape == expected_shape
    assert jnp.allclose(out_f32, ref, atol=1e-4, rtol=1e-4), "f32 mismatch vs reference"

    # default bf16 compute path (MXU-friendly operands, f32 accumulation).
    out_bf16 = jax.block_until_ready(
        sepconv1d(x, params, kernel=K, stride=STRIDE, pad=PAD))
    assert out_bf16.shape == expected_shape
    assert jnp.allclose(out_bf16, ref, atol=5e-2, rtol=5e-2), "bf16 mismatch vs reference"

    print("KERNEL_OK")
</pallas_src>

<mosaic_0001>
module attributes {stable_mosaic.version = 11 : i64} {
  func.func @sepconv1d_kernel(%arg0: i32, %arg1: i32, %arg2: memref<1x1x1x4x130xf32, #tpu.memory_space<vmem>>, %arg3: memref<3x8x4xf32, #tpu.memory_space<vmem>>, %arg4: memref<8x1xf32, #tpu.memory_space<vmem>>, %arg5: memref<8x1xf32, #tpu.memory_space<vmem>>, %arg6: memref<8x1xf32, #tpu.memory_space<vmem>>, %arg7: memref<8x1xf32, #tpu.memory_space<vmem>>, %arg8: memref<1x8x128xf32, #tpu.memory_space<vmem>>) attributes {dimension_semantics = [#tpu.dimension_semantics<parallel>, #tpu.dimension_semantics<parallel>], iteration_bounds = array<i64: 2, 1>, scalar_prefetch = 0 : i64, scratch_operands = 0 : i64, tpu.core_type = #tpu.core_type<tc>, window_params = [{transform_indices = @transform_0, window_bounds = array<i64: 1, 1, 1, 4, 130>}, {pipeline_mode = #tpu.pipeline_mode<synchronous>, transform_indices = @transform_1, window_bounds = array<i64: 3, 8, 4>}, {pipeline_mode = #tpu.pipeline_mode<synchronous>, transform_indices = @transform_2, window_bounds = array<i64: 8, 1>}, {pipeline_mode = #tpu.pipeline_mode<synchronous>, transform_indices = @transform_3, window_bounds = array<i64: 8, 1>}, {pipeline_mode = #tpu.pipeline_mode<synchronous>, transform_indices = @transform_4, window_bounds = array<i64: 8, 1>}, {pipeline_mode = #tpu.pipeline_mode<synchronous>, transform_indices = @transform_5, window_bounds = array<i64: 8, 1>}, {transform_indices = @transform_6, window_bounds = array<i64: 1, 8, 128>}]} {
    %cst = arith.constant 0.000000e+00 : f32
    %0 = vector.broadcast %cst : f32 to vector<8x128xf32>
    %c0 = arith.constant 0 : index
    %c0_0 = arith.constant 0 : index
    %c0_1 = arith.constant 0 : index
    %c0_2 = arith.constant 0 : index
    %c0_3 = arith.constant 0 : index
    %1 = vector.load %arg2[%c0, %c0_0, %c0_1, %c0_2, %c0_3] : memref<1x1x1x4x130xf32, #tpu.memory_space<vmem>>, vector<1x1x1x4x128xf32>
    %2 = vector.shape_cast %1 : vector<1x1x1x4x128xf32> to vector<4x128xf32>
    %c0_4 = arith.constant 0 : index
    %c0_5 = arith.constant 0 : index
    %c0_6 = arith.constant 0 : index
    %3 = vector.load %arg3[%c0_4, %c0_5, %c0_6] : memref<3x8x4xf32, #tpu.memory_space<vmem>>, vector<1x8x4xf32>
    %4 = vector.shape_cast %3 : vector<1x8x4xf32> to vector<8x4xf32>
    %cst_7 = arith.constant dense<0.000000e+00> : vector<8x128xf32>
    %5 = tpu.matmul %4, %2, %cst_7 {dimension_numbers = #tpu.dot_dimension_numbers<[1], [0], [0], [1], [0, 0, 1, 1], [], []>} : vector<8x4xf32>, vector<4x128xf32>, vector<8x128xf32> -> vector<8x128xf32>
    %6 = arith.addf %0, %5 : vector<8x128xf32>
    %c0_8 = arith.constant 0 : index
    %c0_9 = arith.constant 0 : index
    %c0_10 = arith.constant 0 : index
    %c0_11 = arith.constant 0 : index
    %c1 = arith.constant 1 : index
    %7 = vector.load %arg2[%c0_8, %c0_9, %c0_10, %c0_11, %c1] : memref<1x1x1x4x130xf32, #tpu.memory_space<vmem>>, vector<1x1x1x4x128xf32>
    %8 = vector.shape_cast %7 : vector<1x1x1x4x128xf32> to vector<4x128xf32>
    %c1_12 = arith.constant 1 : index
    %c0_13 = arith.constant 0 : index
    %c0_14 = arith.constant 0 : index
    %9 = vector.load %arg3[%c1_12, %c0_13, %c0_14] : memref<3x8x4xf32, #tpu.memory_space<vmem>>, vector<1x8x4xf32>
    %10 = vector.shape_cast %9 : vector<1x8x4xf32> to vector<8x4xf32>
    %cst_15 = arith.constant dense<0.000000e+00> : vector<8x128xf32>
    %11 = tpu.matmul %10, %8, %cst_15 {dimension_numbers = #tpu.dot_dimension_numbers<[1], [0], [0], [1], [0, 0, 1, 1], [], []>} : vector<8x4xf32>, vector<4x128xf32>, vector<8x128xf32> -> vector<8x128xf32>
    %12 = arith.addf %6, %11 : vector<8x128xf32>
    %c0_16 = arith.constant 0 : index
    %c0_17 = arith.constant 0 : index
    %c0_18 = arith.constant 0 : index
    %c0_19 = arith.constant 0 : index
    %c2 = arith.constant 2 : index
    %13 = vector.load %arg2[%c0_16, %c0_17, %c0_18, %c0_19, %c2] : memref<1x1x1x4x130xf32, #tpu.memory_space<vmem>>, vector<1x1x1x4x128xf32>
    %14 = vector.shape_cast %13 : vector<1x1x1x4x128xf32> to vector<4x128xf32>
    %c2_20 = arith.constant 2 : index
    %c0_21 = arith.constant 0 : index
    %c0_22 = arith.constant 0 : index
    %15 = vector.load %arg3[%c2_20, %c0_21, %c0_22] : memref<3x8x4xf32, #tpu.memory_space<vmem>>, vector<1x8x4xf32>
    %16 = vector.shape_cast %15 : vector<1x8x4xf32> to vector<8x4xf32>
    %cst_23 = arith.constant dense<0.000000e+00> : vector<8x128xf32>
    %17 = tpu.matmul %16, %14, %cst_23 {dimension_numbers = #tpu.dot_dimension_numbers<[1], [0], [0], [1], [0, 0, 1, 1], [], []>} : vector<8x4xf32>, vector<4x128xf32>, vector<8x128xf32> -> vector<8x128xf32>
    %18 = arith.addf %12, %17 : vector<8x128xf32>
    %c0_24 = arith.constant 0 : index
    %c0_25 = arith.constant 0 : index
    %19 = vector.load %arg4[%c0_24, %c0_25] : memref<8x1xf32, #tpu.memory_space<vmem>>, vector<8x1xf32>
    %20 = vector.broadcast %19 : vector<8x1xf32> to vector<8x128xf32>
    %21 = arith.addf %18, %20 : vector<8x128xf32>
    %cst_26 = arith.constant 0.000000e+00 : f32
    %22 = vector.broadcast %cst_26 : f32 to vector<8x128xf32>
    %23 = arith.cmpf ogt, %21, %22 : vector<8x128xf32>
    %c0_27 = arith.constant 0 : index
    %c0_28 = arith.constant 0 : index
    %24 = vector.load %arg5[%c0_27, %c0_28] : memref<8x1xf32, #tpu.memory_space<vmem>>, vector<8x1xf32>
    %25 = vector.broadcast %24 : vector<8x1xf32> to vector<8x128xf32>
    %26 = arith.mulf %21, %25 : vector<8x128xf32>
    %c0_29 = arith.constant 0 : index
    %c0_30 = arith.constant 0 : index
    %27 = vector.load %arg6[%c0_29, %c0_30] : memref<8x1xf32, #tpu.memory_space<vmem>>, vector<8x1xf32>
    %28 = vector.broadcast %27 : vector<8x1xf32> to vector<8x128xf32>
    %29 = arith.mulf %21, %28 : vector<8x128xf32>
    %30 = arith.select %23, %26, %29 : vector<8x128xi1>, vector<8x128xf32>
    %c0_31 = arith.constant 0 : index
    %c0_32 = arith.constant 0 : index
    %31 = vector.load %arg7[%c0_31, %c0_32] : memref<8x1xf32, #tpu.memory_space<vmem>>, vector<8x1xf32>
    %32 = vector.broadcast %31 : vector<8x1xf32> to vector<8x128xf32>
    %33 = arith.addf %30, %32 : vector<8x128xf32>
    %c0_33 = arith.constant 0 : index
    %c0_34 = arith.constant 0 : index
    %c0_35 = arith.constant 0 : index
    %34 = vector.load %arg8[%c0_33, %c0_34, %c0_35] : memref<1x8x128xf32, #tpu.memory_space<vmem>>, vector<1x8x128xf32>
    %35 = vector.shape_cast %34 : vector<1x8x128xf32> to vector<8x128xf32>
    %36 = vector.shape_cast %33 : vector<8x128xf32> to vector<1x8x128xf32>
    tpu.vector_store %arg8[%c0_33, %c0_34, %c0_35], %36 {strides = array<i32>} : memref<1x8x128xf32, #tpu.memory_space<vmem>>, vector<1x8x128xf32>,
    return
  }
  func.func @transform_0(%arg0: i32, %arg1: i32) -> (i32, i32, i32, i32, i32) {
    %c0_i32 = arith.constant 0 : i32
    %c0_i32_0 = arith.constant 0 : i32
    %c0_i32_1 = arith.constant 0 : i32
    %c0_i32_2 = arith.constant 0 : i32
    return %arg0, %arg1, %c0_i32, %c0_i32_0, %c0_i32_1 : i32, i32, i32, i32, i32
  }
  func.func @transform_1(%arg0: i32, %arg1: i32) -> (i32, i32, i32) {
    %c0_i32 = arith.constant 0 : i32
    %c0_i32_0 = arith.constant 0 : i32
    %c0_i32_1 = arith.constant 0 : i32
    %c0_i32_2 = arith.constant 0 : i32
    return %c0_i32, %c0_i32_0, %c0_i32_1 : i32, i32, i32
  }
  func.func @transform_2(%arg0: i32, %arg1: i32) -> (i32, i32) {
    %c0_i32 = arith.constant 0 : i32
    %c0_i32_0 = arith.constant 0 : i32
    %c0_i32_1 = arith.constant 0 : i32
    return %c0_i32, %c0_i32_0 : i32, i32
  }
  func.func @transform_3(%arg0: i32, %arg1: i32) -> (i32, i32) {
    %c0_i32 = arith.constant 0 : i32
    %c0_i32_0 = arith.constant 0 : i32
    %c0_i32_1 = arith.constant 0 : i32
    return %c0_i32, %c0_i32_0 : i32, i32
  }
  func.func @transform_4(%arg0: i32, %arg1: i32) -> (i32, i32) {
    %c0_i32 = arith.constant 0 : i32
    %c0_i32_0 = arith.constant 0 : i32
    %c0_i32_1 = arith.constant 0 : i32
    return %c0_i32, %c0_i32_0 : i32, i32
  }
  func.func @transform_5(%arg0: i32, %arg1: i32) -> (i32, i32) {
    %c0_i32 = arith.constant 0 : i32
    %c0_i32_0 = arith.constant 0 : i32
    %c0_i32_1 = arith.constant 0 : i32
    return %c0_i32, %c0_i32_0 : i32, i32
  }
  func.func @transform_6(%arg0: i32, %arg1: i32) -> (i32, i32, i32) {
    %c0_i32 = arith.constant 0 : i32
    %c0_i32_0 = arith.constant 0 : i32
    return %arg0, %c0_i32, %arg1 : i32, i32, i32
  }
}

</mosaic_0001>

<llo_original>
// kernel: tpu_custom_call.1
$region0: #{tpu_custom_call.1}
  #allocation0 [shape = 'u32[]', space=smem, size = 0x4, offset = 0x4, fixed_abs, tag = 'smem constant byte address 0x4 - core index']
  #allocation1 [shape = 'u32[144,128]{1,0:T(1,128)}', space=vmem, size = 0x12000, scoped, tag = 'internal scratch']
  %s0 = inlined_call_operand.vmem [shape: f32[2,1,1,4,130], index: 0, kind: input, shape index: {}]
  %s1 = inlined_call_operand.vmem [shape: f32[3,8,4], index: 1, kind: input, shape index: {}]
  %s2 = inlined_call_operand.vmem [shape: f32[8,1], index: 2, kind: input, shape index: {}]
  %s3 = inlined_call_operand.vmem [shape: f32[8,1], index: 3, kind: input, shape index: {}]
  %s4 = inlined_call_operand.vmem [shape: f32[8,1], index: 4, kind: input, shape index: {}]
  %s5 = inlined_call_operand.vmem [shape: f32[8,1], index: 5, kind: input, shape index: {}]
  %s6 = inlined_call_operand.hbm [shape: f32[2,8,128], index: 6, kind: output, shape index: {}]
  %s7 = sld [smem:[#allocation0]]
  $region57: #{tpu_custom_call.1} parent=0
    _
  %s9 = ssub.s32 1, %s7
  %s10 = scalar_select 0, %s9, %s7
  $region1: #{tpu_custom_call.1} parent=0
    #allocation2 [shape = 'u8[8192]{0}', space=vmem, size = 0x2000, scoped, tag = 'output window, operand 0']
    #allocation3 [shape = 's32[2]{0}', space=sflag, size = 0x8, scoped, tag = 'scoped memory for tpu_custom_call.1']
    %11 = vsyncpa [#allocation3], 0
    %s12 = scalar_lea.sflag [#allocation3], 1
    %13 = vsyncpa %s12, 0
    loop: start=0, step=1, limit=4
    $region2: #{tpu_custom_call.1} parent=1 // loop_pre_header
      _
    $region3: #{tpu_custom_call.1} parent=1 // loop_header
      %s15 = sphi 0, %s19
      %p16 = scmp.ge.s32.totalorder %s15, 4
      %s22 = sphi 0, %s34
      %s23 = sphi 0, %s30
      %s24 = sphi 0, %s22
      %s25 = sphi 0, %s23
      %s26 = sphi 0, %s24
      %s27 = sphi 0, %s25
      %s39 = sphi 0, %s41
      %s42 = sphi 0, %s39
      %s43 = sphi 0, %s42
      %s59 = sphi 0, %s43
      %s63 = sphi 0, %s63
      %s65 = sphi 0, %s63
      %s66 = sphi 0, %s65
      %s80 = sphi 0, %s66
      %s84 = sphi 0, %s84
      %s86 = sphi 0, %s84
      %s87 = sphi 0, %s86
      %s101 = sphi 0, %s87
      %s105 = sphi 0, %s105
      %s107 = sphi 0, %s105
      %s108 = sphi 0, %s107
      %s122 = sphi 0, %s108
      %s126 = sphi 0, %s126
      %s128 = sphi 0, %s126
      %s129 = sphi 0, %s128
      %s143 = sphi 0, %s129
      %s147 = sphi 0, %s147
      %s149 = sphi 0, %s147
      %s150 = sphi 0, %s149
      %s164 = sphi 0, %s150
      %s172 = sphi 0, %s174
      %s175 = sphi 0, %s172
      %s176 = sphi 0, %s175
      %s192 = sphi 0, %s176
    $region4: #{tpu_custom_call.1} parent=1 // loop_header_branch
      %18 = sbr.rel (%p16) target = $region8
    $region5: #{tpu_custom_call.1} parent=1 // loop_body
      %s20 = ssub.s32 %s15, 1
      %s21 = ssub.s32 %s15, 2
      %s28 = sadd.s32 1, %s23
      %p29 = scmp.ge.s32.totalorder %s28, 1
      %s30 = scalar_select %p29, 0, %s28
      %s31 = sadd.s32 1, %s22
      %s32 = scalar_select %p29, %s31, %s22
      %p33 = scmp.ge.s32.totalorder %s32, 2
      %s34 = scalar_select %p33, 0, %s32
      %s35 = ssub.s32 %s22, %s34
      %s36 = ssub.s32 %s23, %s30
      %s37 = sor.u32 %s35, %s36
      %p38 = scmp.eq.s32.totalorder %s37, 0
      %s40 = sadd.s32 %s39, 1
      %s41 = scalar_select %p38, %s39, %s40
      %p44 = pneg %p38
      %p45 = scmp.eq.s32.totalorder %s15, 1
      %p46 = por %p44, %p45
      %p47 = scmp.ne.s32.totalorder %s39, %s42
      %p48 = scmp.eq.s32.totalorder %s15, 0
      %p49 = por %p47, %p48
      %p50 = scmp.ne.s32.totalorder %s39, %s42
      %p51 = scmp.eq.s32.totalorder %s20, 1
      %p52 = por %p50, %p51
      %p53 = scmp.ne.s32.totalorder %s42, %s43
      %p54 = scmp.eq.s32.totalorder %s20, 0
      %p55 = por %p53, %p54
      %p56 = scmp.ne.s32.totalorder %s42, %s43
      %p57 = scmp.eq.s32.totalorder %s21, 1
      %p58 = por %p56, %p57
      %p60 = scmp.ne.s32.totalorder %s43, %s59
      %p61 = scmp.eq.s32.totalorder %s21, 0
      %p62 = por %p60, %p61
      %s64 = sadd.s32 %s63, 1
      %p67 = scmp.eq.s32.totalorder %s15, 1
      %p68 = scmp.ne.s32.totalorder %s63, %s65
      %p69 = scmp.eq.s32.totalorder %s15, 0
      %p70 = por %p68, %p69
      %p71 = scmp.ne.s32.totalorder %s63, %s65
      %p72 = scmp.eq.s32.totalorder %s20, 1
      %p73 = por %p71, %p72
      %p74 = scmp.ne.s32.totalorder %s65, %s66
      %p75 = scmp.eq.s32.totalorder %s20, 0
      %p76 = por %p74, %p75
      %p77 = scmp.ne.s32.totalorder %s65, %s66
      %p78 = scmp.eq.s32.totalorder %s21, 1
      %p79 = por %p77, %p78
      %p81 = scmp.ne.s32.totalorder %s66, %s80
      %p82 = scmp.eq.s32.totalorder %s21, 0
      %p83 = por %p81, %p82
      %s85 = sadd.s32 %s84, 1
      %p88 = scmp.eq.s32.totalorder %s15, 1
      %p89 = scmp.ne.s32.totalorder %s84, %s86
      %p90 = scmp.eq.s32.totalorder %s15, 0
      %p91 = por %p89, %p90
      %p92 = scmp.ne.s32.totalorder %s84, %s86
      %p93 = scmp.eq.s32.totalorder %s20, 1
      %p94 = por %p92, %p93
      %p95 = scmp.ne.s32.totalorder %s86, %s87
      %p96 = scmp.eq.s32.totalorder %s20, 0
      %p97 = por %p95, %p96
      %p98 = scmp.ne.s32.totalorder %s86, %s87
      %p99 = scmp.eq.s32.totalorder %s21, 1
      %p100 = por %p98, %p99
      %p102 = scmp.ne.s32.totalorder %s87, %s101
      %p103 = scmp.eq.s32.totalorder %s21, 0
      %p104 = por %p102, %p103
      %s106 = sadd.s32 %s105, 1
      %p109 = scmp.eq.s32.totalorder %s15, 1
      %p110 = scmp.ne.s32.totalorder %s105, %s107
      %p111 = scmp.eq.s32.totalorder %s15, 0
      %p112 = por %p110, %p111
      %p113 = scmp.ne.s32.totalorder %s105, %s107
      %p114 = scmp.eq.s32.totalorder %s20, 1
      %p115 = por %p113, %p114
      %p116 = scmp.ne.s32.totalorder %s107, %s108
      %p117 = scmp.eq.s32.totalorder %s20, 0
      %p118 = por %p116, %p117
      %p119 = scmp.ne.s32.totalorder %s107, %s108
      %p120 = scmp.eq.s32.totalorder %s21, 1
      %p121 = por %p119, %p120
      %p123 = scmp.ne.s32.totalorder %s108, %s122
      %p124 = scmp.eq.s32.totalorder %s21, 0
      %p125 = por %p123, %p124
      %s127 = sadd.s32 %s126, 1
      %p130 = scmp.eq.s32.totalorder %s15, 1
      %p131 = scmp.ne.s32.totalorder %s126, %s128
      %p132 = scmp.eq.s32.totalorder %s15, 0
      %p133 = por %p131, %p132
      %p134 = scmp.ne.s32.totalorder %s126, %s128
      %p135 = scmp.eq.s32.totalorder %s20, 1
      %p136 = por %p134, %p135
      %p137 = scmp.ne.s32.totalorder %s128, %s129
      %p138 = scmp.eq.s32.totalorder %s20, 0
      %p139 = por %p137, %p138
      %p140 = scmp.ne.s32.totalorder %s128, %s129
      %p141 = scmp.eq.s32.totalorder %s21, 1
      %p142 = por %p140, %p141
      %p144 = scmp.ne.s32.totalorder %s129, %s143
      %p145 = scmp.eq.s32.totalorder %s21, 0
      %p146 = por %p144, %p145
      %s148 = sadd.s32 %s147, 1
      %p151 = scmp.eq.s32.totalorder %s15, 1
      %p152 = scmp.ne.s32.totalorder %s147, %s149
      %p153 = scmp.eq.s32.totalorder %s15, 0
      %p154 = por %p152, %p153
      %p155 = scmp.ne.s32.totalorder %s147, %s149
      %p156 = scmp.eq.s32.totalorder %s20, 1
      %p157 = por %p155, %p156
      %p158 = scmp.ne.s32.totalorder %s149, %s150
      %p159 = scmp.eq.s32.totalorder %s20, 0
      %p160 = por %p158, %p159
      %p161 = scmp.ne.s32.totalorder %s149, %s150
      %p162 = scmp.eq.s32.totalorder %s21, 1
      %p163 = por %p161, %p162
      %p165 = scmp.ne.s32.totalorder %s150, %s164
      %p166 = scmp.eq.s32.totalorder %s21, 0
      %p167 = por %p165, %p166
      %s168 = ssub.s32 %s22, %s34
      %s169 = ssub.s32 %s23, %s30
      %s170 = sor.u32 %s168, %s169
      %p171 = scmp.eq.s32.totalorder %s170, 0
      %s173 = sadd.s32 %s172, 1
      %s174 = scalar_select %p171, %s172, %s173
      %p177 = pneg %p171
      %p178 = scmp.eq.s32.totalorder %s15, 1
      %p179 = por %p177, %p178
      %p180 = scmp.ne.s32.totalorder %s172, %s175
      %p181 = scmp.eq.s32.totalorder %s15, 0
      %p182 = por %p180, %p181
      %p183 = scmp.ne.s32.totalorder %s172, %s175
      %p184 = scmp.eq.s32.totalorder %s20, 1
      %p185 = por %p183, %p184
      %p186 = scmp.ne.s32.totalorder %s175, %s176
      %p187 = scmp.eq.s32.totalorder %s20, 0
      %p188 = por %p186, %p187
      %p189 = scmp.ne.s32.totalorder %s175, %s176
      %p190 = scmp.eq.s32.totalorder %s21, 1
      %p191 = por %p189, %p190
      %p193 = scmp.ne.s32.totalorder %s176, %s192
      %p194 = scmp.eq.s32.totalorder %s21, 0
      %p195 = por %p193, %p194
      %p196 = scmp.le.s32.totalorder 1, %s15
      %p197 = scmp.lt.s32.totalorder %s15, 3
      %p198 = pnand %p196, %p197
      %p199 = pneg %p198
      // Predicated region
      $region9: #{tpu_custom_call.1} parent=5 // pred_check
        _
      $region10: #{tpu_custom_call.1} parent=5 // pred_check_branch
        %201 = sbr.rel (%p198) target = $region12
      $region11: #{tpu_custom_call.1} parent=5 // pred_region
        %s202 = ssub.s32 %s15, 1
        // Predicated region
        $region13: #{tpu_custom_call.1} parent=11 // pred_check
          %p203 = pneg %p76
        $region14: #{tpu_custom_call.1} parent=11 // pred_check_branch
          %205 = sbr.rel (%p203) target = $region16
        $region15: #{tpu_custom_call.1} parent=11 // pred_region
          _
        $region16: #{tpu_custom_call.1} parent=11 // pred_fallthru
          _
        // Predicated region
        $region17: #{tpu_custom_call.1} parent=11 // pred_check
          %p206 = pneg %p97
        $region18: #{tpu_custom_call.1} parent=11 // pred_check_branch
          %208 = sbr.rel (%p206) target = $region20
        $region19: #{tpu_custom_call.1} parent=11 // pred_region
          _
        $region20: #{tpu_custom_call.1} parent=11 // pred_fallthru
          _
        // Predicated region
        $region21: #{tpu_custom_call.1} parent=11 // pred_check
          %p209 = pneg %p118
        $region22: #{tpu_custom_call.1} parent=11 // pred_check_branch
          %211 = sbr.rel (%p209) target = $region24
        $region23: #{tpu_custom_call.1} parent=11 // pred_region
          _
        $region24: #{tpu_custom_call.1} parent=11 // pred_fallthru
          _
        // Predicated region
        $region25: #{tpu_custom_call.1} parent=11 // pred_check
          %p212 = pneg %p139
        $region26: #{tpu_custom_call.1} parent=11 // pred_check_branch
          %214 = sbr.rel (%p212) target = $region28
        $region27: #{tpu_custom_call.1} parent=11 // pred_region
          _
        $region28: #{tpu_custom_call.1} parent=11 // pred_fallthru
          _
        // Predicated region
        $region29: #{tpu_custom_call.1} parent=11 // pred_check
          %p215 = pneg %p160
        $region30: #{tpu_custom_call.1} parent=11 // pred_check_branch
          %217 = sbr.rel (%p215) target = $region32
        $region31: #{tpu_custom_call.1} parent=11 // pred_region
          _
        $region32: #{tpu_custom_call.1} parent=11 // pred_fallthru
          _
      $region12: #{tpu_custom_call.1} parent=5 // pred_fallthru
        _
      %p218 = scmp.lt.s32.totalorder %s15, 2
      // Predicated region
      $region33: #{tpu_custom_call.1} parent=5 // pred_check
        %p219 = pneg %p218
      $region34: #{tpu_custom_call.1} parent=5 // pred_check_branch
        %221 = sbr.rel (%p219) target = $region36
      $region35: #{tpu_custom_call.1} parent=5 // pred_region
        // Predicated region
        $region37: #{tpu_custom_call.1} parent=35 // pred_check
          %p222 = pneg %p49
        $region38: #{tpu_custom_call.1} parent=35 // pred_check_branch
          %224 = sbr.rel (%p222) target = $region40
        $region39: #{tpu_custom_call.1} parent=35 // pred_region
          %p225 = scmp.lt.s32.totalorder %s22, 1
          %s226 = scalar_select %p225, %s22, 1
          %p227 = scmp.lt.s32.totalorder %s23, 0
          %s228 = scalar_select %p227, %s23, 0
          %s229 = smul.addr %s228, 2
          %s230 = smul.addr %s226, 2
          %s231 = sadd.s32 %s229, %s230
          %s232 = smul.addr %s231, 4
          %s233 = scalar_lea.vmem %s0, %s232
        $region40: #{tpu_custom_call.1} parent=35 // pred_fallthru
          _
      $region36: #{tpu_custom_call.1} parent=5 // pred_fallthru
        _
      %p234 = scmp.le.s32.totalorder 1, %s15
      %p235 = scmp.lt.s32.totalorder %s15, 3
      %p236 = pnand %p234, %p235
      %p237 = pneg %p236
      // Predicated region
      $region41: #{tpu_custom_call.1} parent=5 // pred_check
        _
      $region42: #{tpu_custom_call.1} parent=5 // pred_check_branch
        %239 = sbr.rel (%p236) target = $region44
      $region43: #{tpu_custom_call.1} parent=5 // pred_region
        %s240 = ssub.s32 %s15, 1
        %p241 = scmp.lt.s32.totalorder %s24, 1
        %s242 = scalar_select %p241, %s24, 1
        %p243 = scmp.lt.s32.totalorder %s25, 0
        %s244 = scalar_select %p243, %s25, 0
        %s245 = smul.addr %s244, 2
        %s246 = smul.addr %s242, 2
        %s247 = sadd.s32 %s245, %s246
        %s248 = smul.addr %s247, 4
        %s249 = scalar_lea.vmem %s0, %s248
        %p250 = pneg %p55
        %p251 = pneg %p52
        %p252 = pneg %p76
        %p253 = pneg %p73
        %p254 = pneg %p97
        %p255 = pneg %p94
        %p256 = pneg %p118
        %p257 = pneg %p115
        %p258 = pneg %p139
        %p259 = pneg %p136
        %p260 = pneg %p160
        %p261 = pneg %p157
        %p262 = pneg %p188
        %p263 = pneg %p185
        %s264 = sand.u32 %s175, 1
        %s265 = scalar_lea.sflag [#allocation3], %s264
        %s266 = sand.u32 %s175, 1
        %s267 = smul.addr %s266, 8
        %s268 = scalar_lea.vmem [#allocation2], %s267
        %p269 = scmp.lt.s32.totalorder %s24, 1
        %s270 = scalar_select %p269, %s24, 1
        %p271 = scmp.lt.s32.totalorder %s25, 0
        %s272 = scalar_select %p271, %s25, 0
        %s273 = smul.addr %s272, 2
        %s274 = smul.addr %s270, 2
        %s275 = sadd.s32 %s273, %s274
        %s276 = smul.addr %s275, 4
        %s277 = scalar_lea.vmem %s0, %s276
        %v278 = vld [vmem:[%s277] sm:$0xf]
        %v279 = vld [vmem:[%s1] sm:$0xff]
        %v280 = vld [vmem:[%s277] sm:$0xff]
        %s281 = scalar_lea.vmem %s1, 8
        %v282 = vld [vmem:[%s281] sm:$0xff]
        %v284 = vcombine.high %v280, %v280
        %285 = vrot.lane.b32.xlu0 %v280, 127
        %v286 = vpop.permute.xlu0 %285
        %287 = vrot.lane.b32.xlu0 %v284, 127
        %v288 = vpop.permute.xlu0 %287
        %vm289 = vcmask 1039360
        %v290 = vsel %vm289, %v286, %v288
        %vm291 = vcmask 31744
        %v293 = vsel %vm291, %v282, 0
        %vm295 = vcmask 1043456
        %v296 = vsel %vm295, %v290, 0
        %298 = vmatprep.subr.mxu0 0.0
        %299 = vmatpush1.msra.mxu0 0.0
        %300 = vmatprep.subr.mxu0 0.0
        %301 = vmatpush1.msra.mxu0 0.0
        %302 = vmatprep.subr.mxu0 0.0
        %303 = vmatpush1.msra.mxu0 0.0
        %304 = vmatprep.subr.mxu0 0.0
        %305 = vmatpush1.msra.mxu0 0.0
        %306 = vmatprep.subr.mxu0 0.0
        %307 = vmatpush1.msra.mxu0 0.0
        %308 = vmatprep.subr.mxu0 0.0
        %309 = vmatpush1.msra.mxu0 0.0
        %310 = vmatprep.subr.mxu0 0.0
        %311 = vmatpush1.msra.mxu0 0.0
        %312 = vmatprep.subr.mxu0 0.0
        %313 = vmatpush1.msra.mxu0 0.0
        %314 = vmatprep.subr.mxu0 0.0
        %315 = vmatpush1.msra.mxu0 0.0
        %316 = vmatprep.subr.mxu0 0.0
        %317 = vmatpush1.msra.mxu0 0.0
        %318 = vmatprep.subr.mxu0 0.0
        %319 = vmatpush1.msra.mxu0 0.0
        %320 = vmatprep.subr.mxu0 0.0
        %321 = vmatpush1.msra.mxu0 0.0
        %322 = vmatprep.subr.mxu0 0.0
        %323 = vmatpush1.msra.mxu0 0.0
        %324 = vmatprep.subr.mxu0 0.0
        %325 = vmatpush1.msra.mxu0 0.0
        %326 = vmatprep.subr.mxu0 0.0
        %327 = vmatpush1.msra.mxu0 0.0
        %328 = vmatprep.subr.mxu0 0.0
        %329 = vmatpush1.msra.mxu0 %v296
        %330 = vmatprep.subr.mxu0 0.0
        %331 = vmatpush2.msra.mxu0 0.0
        %332 = vmatprep.subr.mxu0 0.0
        %333 = vmatpush2.msra.mxu0 0.0
        %334 = vmatprep.subr.mxu0 0.0
        %335 = vmatpush2.msra.mxu0 0.0
        %336 = vmatprep.subr.mxu0 0.0
        %337 = vmatpush2.msra.mxu0 0.0
        %338 = vmatprep.subr.mxu0 0.0
        %339 = vmatpush2.msra.mxu0 0.0
        %340 = vmatprep.subr.mxu0 0.0
        %341 = vmatpush2.msra.mxu0 0.0
        %342 = vmatprep.subr.mxu0 0.0
        %343 = vmatpush2.msra.mxu0 0.0
        %344 = vmatprep.subr.mxu0 0.0
        %345 = vmatpush2.msra.mxu0 0.0
        %346 = vmatprep.subr.mxu0 0.0
        %347 = vmatpush2.msra.mxu0 0.0
        %348 = vmatprep.subr.mxu0 0.0
        %349 = vmatpush2.msra.mxu0 0.0
        %350 = vmatprep.subr.mxu0 0.0
        %351 = vmatpush2.msra.mxu0 0.0
        %352 = vmatprep.subr.mxu0 0.0
        %353 = vmatpush2.msra.mxu0 0.0
        %354 = vmatprep.subr.mxu0 0.0
        %355 = vmatpush2.msra.mxu0 0.0
        %356 = vmatprep.subr.mxu0 0.0
        %357 = vmatpush2.msra.mxu0 0.0
        %358 = vmatprep.subr.mxu0 0.0
        %359 = vmatpush2.msra.mxu0 0.0
        %360 = vmatprep.subr.mxu0 0.0
        %361 = vmatpush2.msra.mxu0 0.0
        %362 = vmatprep.mubr.f32.mxu0 0.0
        %363 = vmatmul.mubr.f32.gmra.mxu0 %v293
        %v364 = vpop.f32.mrf.mxu0
        %v365 = vadd.f32 0.0, %v364
        %v366 = vpop.f32.mrf.mxu0
        %367 = vdwg.mxu0
        %v369 = vsel %vm291, %v279, 0
        %v372 = vsel %vm295, %v278, 0
        %374 = vmatprep.subr.mxu0 0.0
        %375 = vmatpush1.msra.mxu0 0.0
        %376 = vmatprep.subr.mxu0 0.0
        %377 = vmatpush1.msra.mxu0 0.0
        %378 = vmatprep.subr.mxu0 0.0
        %379 = vmatpush1.msra.mxu0 0.0
        %380 = vmatprep.subr.mxu0 0.0
        %381 = vmatpush1.msra.mxu0 0.0
        %382 = vmatprep.subr.mxu0 0.0
        %383 = vmatpush1.msra.mxu0 0.0
        %384 = vmatprep.subr.mxu0 0.0
        %385 = vmatpush1.msra.mxu0 0.0
        %386 = vmatprep.subr.mxu0 0.0
        %387 = vmatpush1.msra.mxu0 0.0
        %388 = vmatprep.subr.mxu0 0.0
        %389 = vmatpush1.msra.mxu0 0.0
        %390 = vmatprep.subr.mxu0 0.0
        %391 = vmatpush1.msra.mxu0 0.0
        %392 = vmatprep.subr.mxu0 0.0
        %393 = vmatpush1.msra.mxu0 0.0
        %394 = vmatprep.subr.mxu0 0.0
        %395 = vmatpush1.msra.mxu0 0.0
        %396 = vmatprep.subr.mxu0 0.0
        %397 = vmatpush1.msra.mxu0 0.0
        %398 = vmatprep.subr.mxu0 0.0
        %399 = vmatpush1.msra.mxu0 0.0
        %400 = vmatprep.subr.mxu0 0.0
        %401 = vmatpush1.msra.mxu0 0.0
        %402 = vmatprep.subr.mxu0 0.0
        %403 = vmatpush1.msra.mxu0 0.0
        %404 = vmatprep.subr.mxu0 0.0
        %405 = vmatpush1.msra.mxu0 %v372
        %406 = vmatprep.subr.mxu0 0.0
        %407 = vmatpush2.msra.mxu0 0.0
        %408 = vmatprep.subr.mxu0 0.0
        %409 = vmatpush2.msra.mxu0 0.0
        %410 = vmatprep.subr.mxu0 0.0
        %411 = vmatpush2.msra.mxu0 0.0
        %412 = vmatprep.subr.mxu0 0.0
        %413 = vmatpush2.msra.mxu0 0.0
        %414 = vmatprep.subr.mxu0 0.0
        %415 = vmatpush2.msra.mxu0 0.0
        %416 = vmatprep.subr.mxu0 0.0
        %417 = vmatpush2.msra.mxu0 0.0
        %418 = vmatprep.subr.mxu0 0.0
        %419 = vmatpush2.msra.mxu0 0.0
        %420 = vmatprep.subr.mxu0 0.0
        %421 = vmatpush2.msra.mxu0 0.0
        %422 = vmatprep.subr.mxu0 0.0
        %423 = vmatpush2.msra.mxu0 0.0
        %424 = vmatprep.subr.mxu0 0.0
        %425 = vmatpush2.msra.mxu0 0.0
        %426 = vmatprep.subr.mxu0 0.0
        %427 = vmatpush2.msra.mxu0 0.0
        %428 = vmatprep.subr.mxu0 0.0
        %429 = vmatpush2.msra.mxu0 0.0
        %430 = vmatprep.subr.mxu0 0.0
        %431 = vmatpush2.msra.mxu0 0.0
        %432 = vmatprep.subr.mxu0 0.0
        %433 = vmatpush2.msra.mxu0 0.0
        %434 = vmatprep.subr.mxu0 0.0
        %435 = vmatpush2.msra.mxu0 0.0
        %436 = vmatprep.subr.mxu0 0.0
        %437 = vmatpush2.msra.mxu0 0.0
        %438 = vmatprep.mubr.f32.mxu0 0.0
        %439 = vmatmul.mubr.f32.gmra.mxu0 %v369
        %v440 = vpop.f32.mrf.mxu0
        %v441 = vadd.f32 %v365, %v440
        %v442 = vpop.f32.mrf.mxu0
        %443 = vdwg.mxu0
        %v444 = vld [vmem:[%s277] sm:$0xff]
        %s445 = scalar_lea.vmem %s1, 16
        %v446 = vld [vmem:[%s445] sm:$0xff]
        %v448 = vcombine.high %v444, %v444
        %449 = vrot.lane.b32.xlu0 %v444, 126
        %v450 = vpop.permute.xlu0 %449
        %451 = vrot.lane.b32.xlu0 %v448, 126
        %v452 = vpop.permute.xlu0 %451
        %vm453 = vcmask 1031168
        %v454 = vsel %vm453, %v450, %v452
        %v456 = vsel %vm291, %v446, 0
        %v458 = vsel %vm295, %v454, 0
        %460 = vmatprep.subr.mxu0 0.0
        %461 = vmatpush1.msra.mxu0 0.0
        %462 = vmatprep.subr.mxu0 0.0
        %463 = vmatpush1.msra.mxu0 0.0
        %464 = vmatprep.subr.mxu0 0.0
        %465 = vmatpush1.msra.mxu0 0.0
        %466 = vmatprep.subr.mxu0 0.0
        %467 = vmatpush1.msra.mxu0 0.0
        %468 = vmatprep.subr.mxu0 0.0
        %469 = vmatpush1.msra.mxu0 0.0
        %470 = vmatprep.subr.mxu0 0.0
        %471 = vmatpush1.msra.mxu0 0.0
        %472 = vmatprep.subr.mxu0 0.0
        %473 = vmatpush1.msra.mxu0 0.0
        %474 = vmatprep.subr.mxu0 0.0
        %475 = vmatpush1.msra.mxu0 0.0
        %476 = vmatprep.subr.mxu0 0.0
        %477 = vmatpush1.msra.mxu0 0.0
        %478 = vmatprep.subr.mxu0 0.0
        %479 = vmatpush1.msra.mxu0 0.0
        %480 = vmatprep.subr.mxu0 0.0
        %481 = vmatpush1.msra.mxu0 0.0
        %482 = vmatprep.subr.mxu0 0.0
        %483 = vmatpush1.msra.mxu0 0.0
        %484 = vmatprep.subr.mxu0 0.0
        %485 = vmatpush1.msra.mxu0 0.0
        %486 = vmatprep.subr.mxu0 0.0
        %487 = vmatpush1.msra.mxu0 0.0
        %488 = vmatprep.subr.mxu0 0.0
        %489 = vmatpush1.msra.mxu0 0.0
        %490 = vmatprep.subr.mxu0 0.0
        %491 = vmatpush1.msra.mxu0 %v458
        %492 = vmatprep.subr.mxu0 0.0
        %493 = vmatpush2.msra.mxu0 0.0
        %494 = vmatprep.subr.mxu0 0.0
        %495 = vmatpush2.msra.mxu0 0.0
        %496 = vmatprep.subr.mxu0 0.0
        %497 = vmatpush2.msra.mxu0 0.0
        %498 = vmatprep.subr.mxu0 0.0
        %499 = vmatpush2.msra.mxu0 0.0
        %500 = vmatprep.subr.mxu0 0.0
        %501 = vmatpush2.msra.mxu0 0.0
        %502 = vmatprep.subr.mxu0 0.0
        %503 = vmatpush2.msra.mxu0 0.0
        %504 = vmatprep.subr.mxu0 0.0
        %505 = vmatpush2.msra.mxu0 0.0
        %506 = vmatprep.subr.mxu0 0.0
        %507 = vmatpush2.msra.mxu0 0.0
        %508 = vmatprep.subr.mxu0 0.0
        %509 = vmatpush2.msra.mxu0 0.0
        %510 = vmatprep.subr.mxu0 0.0
        %511 = vmatpush2.msra.mxu0 0.0
        %512 = vmatprep.subr.mxu0 0.0
        %513 = vmatpush2.msra.mxu0 0.0
        %514 = vmatprep.subr.mxu0 0.0
        %515 = vmatpush2.msra.mxu0 0.0
        %516 = vmatprep.subr.mxu0 0.0
        %517 = vmatpush2.msra.mxu0 0.0
        %518 = vmatprep.subr.mxu0 0.0
        %519 = vmatpush2.msra.mxu0 0.0
        %520 = vmatprep.subr.mxu0 0.0
        %521 = vmatpush2.msra.mxu0 0.0
        %522 = vmatprep.subr.mxu0 0.0
        %523 = vmatpush2.msra.mxu0 0.0
        %524 = vmatprep.mubr.f32.mxu0 0.0
        %525 = vmatmul.mubr.f32.gmra.mxu0 %v456
        %v526 = vpop.f32.mrf.mxu0
        %v527 = vadd.f32 0.0, %v526
        %v528 = vpop.f32.mrf.mxu0
        %529 = vdwg.mxu0
        %v530 = vadd.f32 %v441, %v527
        %v531 = vld [vmem:[%s2] sm:$0xff]
        %533 = vset.pattern.permute.xlu0 0
        %534 = vperm.xlu0 %533, %v531
        %v535 = vpop.permute.xlu0 %534
        %v537 = vadd.f32 %v530, %v535
        %vm538 = vcmp.gt.f32.partialorder %v537, 0.0
        %v539 = vld [vmem:[%s3] sm:$0xff]
        %541 = vset.pattern.permute.xlu0 0
        %542 = vperm.xlu0 %541, %v539
        %v543 = vpop.permute.xlu0 %542
        %v545 = vmul.f32 %v537, %v543
        %v546 = vld [vmem:[%s4] sm:$0xff]
        %548 = vset.pattern.permute.xlu0 0
        %549 = vperm.xlu0 %548, %v546
        %v550 = vpop.permute.xlu0 %549
        %v552 = vmul.f32 %v537, %v550
        %v553 = vsel %vm538, %v545, %v552
        %v554 = vld [vmem:[%s5] sm:$0xff]
        %556 = vset.pattern.permute.xlu0 0
        %557 = vperm.xlu0 %556, %v554
        %v558 = vpop.permute.xlu0 %557
        %v560 = vadd.f32 %v553, %v558
        %561 = vst [vmem:[%s268] sm:$0xff] %v560
        %s562 = sand.u32 %s175, 1
        %s563 = scalar_lea.sflag [#allocation3], %s562
        %s564 = sand.u32 %s175, 1
        %s565 = smul.addr %s564, 8
        %s566 = scalar_lea.vmem [#allocation2], %s565
        // Predicated region
        $region45: #{tpu_custom_call.1} parent=43 // pred_check
          %p567 = pneg %p185
        $region46: #{tpu_custom_call.1} parent=43 // pred_check_branch
          %569 = sbr.rel (%p567) target = $region48
        $region47: #{tpu_custom_call.1} parent=43 // pred_region
          %s571 = ssub.s32 128, 128
          %572 = vsyncadd %s563, %s571
          %s573 = sadd.s32 %s25, %s24
          %s574 = smul.addr %s573, 128
          %s575 = scalar_lea.hbm %s6, %s574
          %s577 = sshll.u32 %s566, 4
          %s578 = int_to_ptr.vmem [resolvable:$true] %s577
          %580 = dma.vmem_to_hbm [thread:$0]  %s578, 128, %s575, %s563
        $region48: #{tpu_custom_call.1} parent=43 // pred_fallthru
          _
      $region44: #{tpu_custom_call.1} parent=5 // pred_fallthru
        _
      %p581 = scmp.le.s32.totalorder 2, %s15
      // Predicated region
      $region49: #{tpu_custom_call.1} parent=5 // pred_check
        %p582 = pneg %p581
      $region50: #{tpu_custom_call.1} parent=5 // pred_check_branch
        %584 = sbr.rel (%p582) target = $region52
      $region51: #{tpu_custom_call.1} parent=5 // pred_region
        %s585 = ssub.s32 %s15, 2
        // Predicated region
        $region53: #{tpu_custom_call.1} parent=51 // pred_check
          %p586 = pneg %p191
        $region54: #{tpu_custom_call.1} parent=51 // pred_check_branch
          %588 = sbr.rel (%p586) target = $region56
        $region55: #{tpu_custom_call.1} parent=51 // pred_region
          %s589 = sand.u32 %s176, 1
          %s590 = scalar_lea.sflag [#allocation3], %s589
          %s591 = sand.u32 %s176, 1
          %s592 = smul.addr %s591, 8
          %s593 = scalar_lea.vmem [#allocation2], %s592
          %594 = dma.done %s590, 128
        $region56: #{tpu_custom_call.1} parent=51 // pred_fallthru
          _
      $region52: #{tpu_custom_call.1} parent=5 // pred_fallthru
        _
    $region6: #{tpu_custom_call.1} parent=1 // loop_footer
      %s19 = sadd.s32 1, %s15
    $region7: #{tpu_custom_call.1} parent=1 // loop_footer_branch
      %14 = sbr.rel target = $region3
    $region8: #{tpu_custom_call.1} parent=1 // loop_exit
      _
    %595 = vsyncpa [#allocation3], 1
    %s596 = scalar_lea.sflag [#allocation3], 1
    %597 = vsyncpa %s596, 1

</llo_original>
